<compile_context>
chip_gen: v5e
topology: v5e:2x2
jax: 0.10.0
libtpu: 0.0.40
codegen_flags: <defaults>
</compile_context>

<pallas_src>
import functools

import jax
import jax.numpy as jnp
from jax.experimental import pallas as pl
from jax.experimental.pallas import tpu as pltpu


def _round_up(x, m):
    return (x + m - 1) // m * m


def _pad_dim(d):
    # v6e/v7x MXU is 256 wide: pad real feature widths (>=128) to multiples
    # of 256; genuinely tiny dims only to the 128-lane minimum (padding a
    # 32-wide feature to 256 would just multiply wasted flops).
    return _round_up(d, 256) if d >= 128 else 128


def _choose_tiles(n):
    """Node padding + (row tile, aggregation-K tile)."""
    n_pad = _round_up(n, 128)
    tk = min(n_pad, 512)            # aggregation (K) tile
    n_pad = _round_up(n_pad, tk)
    # Row tile: large for HBM bandwidth, but keep the row grid length >= 2 so
    # the "parallel" axis spans both TensorCores on v7x.
    tm = min(n_pad // 2, 512)
    return n_pad, tm, tk


def _vmem_limit_bytes():
    # Raise the default scoped-VMEM limit (16/32/32 MiB on v5e/v6e/v7x)
    # toward physical capacity, leaving double-buffering headroom:
    # ~96 MiB on v5e/v6e (128 MiB physical), ~48 MiB on v7x (64 MiB physical).
    try:
        cap = pltpu.get_tpu_info().vmem_capacity_bytes
    except Exception:
        cap = 64 * 1024 * 1024      # conservative (v7x physical)
    return int(min(cap * 3 // 4, 100 * 1024 * 1024))


# ----------------------------- Pallas kernel ------------------------------- #
def sage_layer_kernel(a_ref, inv_deg_ref, xk_ref, xself_ref, wl_ref, wr_ref,
                      b_ref, o_ref, acc_ref, *, apply_relu):
    """One SAGEConv (mean) layer, K-tiled aggregation + fused linear/ReLU.

    a_ref:       [TM, TK]        int8 raw edge-count tile (un-normalized A)
    inv_deg_ref: [TM, 1]         f32 per-row 1/deg
    xk_ref:      [TK, Din_pad]   bf16 feature K-tile (aggregation operand)
    xself_ref:   [TM, Din_pad]   bf16 self-feature rows for this row tile
    wl_ref:      [Din_pad, Dout] bf16 Wl^T (aggregated-path weight)
    wr_ref:      [Din_pad, Dout] bf16 Wr^T (self-path weight)
    b_ref:       [1, Dout]       f32 bias
    o_ref:       [TM, Dout]      output row tile
    acc_ref:     [TM, Din_pad]   f32 aggregation accumulator (VMEM scratch)
    """
    k = pl.program_id(1)

    @pl.when(k == 0)
    def _():
        acc_ref[...] = jnp.zeros_like(acc_ref)

    # Dequantize int8 counts -> bf16 on the VPU; accumulate the un-normalized
    # sum aggregation in f32 on the MXU.
    a = a_ref[...].astype(jnp.bfloat16)
    acc_ref[...] += jnp.dot(a, xk_ref[...], preferred_element_type=jnp.float32)

    @pl.when(k == pl.num_programs(1) - 1)
    def _():
        # mean = sum * (1/deg) in f32; a single bf16 rounding before lin_l.
        agg = (acc_ref[...] * inv_deg_ref[...]).astype(jnp.bfloat16)
        out = jnp.dot(agg, wl_ref[...], preferred_element_type=jnp.float32)
        out = out + jnp.dot(xself_ref[...], wr_ref[...],
                            preferred_element_type=jnp.float32)
        out = out + b_ref[...]
        if apply_relu:
            out = jnp.maximum(out, 0.0)
        o_ref[...] = out.astype(o_ref.dtype)


def sage_layer(adj_i8, inv_deg, x, wl_t, wr_t, bias, *, tm, tk, apply_relu,
               out_dtype):
    """Run one SAGEConv layer via pallas_call on a (rows, K) grid."""
    n_pad = adj_i8.shape[0]
    d_in_pad = x.shape[1]
    d_out_pad = wl_t.shape[1]
    assert n_pad % tm == 0 and n_pad % tk == 0
    assert wl_t.shape[0] == d_in_pad and wr_t.shape == wl_t.shape

    kernel = functools.partial(sage_layer_kernel, apply_relu=apply_relu)

    return pl.pallas_call(
        kernel,
        out_shape=jax.ShapeDtypeStruct((n_pad, d_out_pad), out_dtype),
        grid=(n_pad // tm, n_pad // tk),
        in_specs=[
            pl.BlockSpec((tm, tk), lambda i, k: (i, k)),               # A int8
            pl.BlockSpec((tm, 1), lambda i, k: (i, 0)),                # 1/deg
            pl.BlockSpec((tk, d_in_pad), lambda i, k: (k, 0)),         # X (K)
            pl.BlockSpec((tm, d_in_pad), lambda i, k: (i, 0)),         # X self
            pl.BlockSpec((d_in_pad, d_out_pad), lambda i, k: (0, 0)),  # Wl^T
            pl.BlockSpec((d_in_pad, d_out_pad), lambda i, k: (0, 0)),  # Wr^T
            pl.BlockSpec((1, d_out_pad), lambda i, k: (0, 0)),         # bias
        ],
        out_specs=pl.BlockSpec((tm, d_out_pad), lambda i, k: (i, 0)),
        scratch_shapes=[pltpu.VMEM((tm, d_in_pad), jnp.float32)],
        compiler_params=pltpu.CompilerParams(
            dimension_semantics=("parallel", "arbitrary"),
            vmem_limit_bytes=_vmem_limit_bytes()),
    )(adj_i8, inv_deg, x, x, wl_t, wr_t, bias)


# ------------------------------- glue / model ------------------------------ #
def build_adjacency(edge_index, n_pad):
    """int8 raw edge counts (exact) + f32 per-row 1/deg for mean aggregation.

    edge_index[0] = source j, edge_index[1] = destination i;
    agg_i = (1/deg_i) * sum_{j:(j->i)} x_j, 0 for isolated nodes.
    Counts are exact in int8 for up to 127 parallel edges per (i, j) pair.
    """
    src, dst = edge_index[0], edge_index[1]
    counts = jnp.zeros((n_pad, n_pad), jnp.int8).at[dst, src].add(1)
    deg = jnp.zeros((n_pad,), jnp.int32).at[dst].add(1)
    inv_deg = (1.0 / jnp.maximum(deg, 1).astype(jnp.float32)).reshape(n_pad, 1)
    return counts, inv_deg


def init_params(key, input_dim, hidden_dim, output_dim, num_layers):
    """Glorot-uniform-ish init for each SAGEConv layer (lin_l, lin_r, bias)."""
    dims = [input_dim] + [hidden_dim] * (num_layers - 1) + [output_dim]
    params = []
    for layer in range(num_layers):
        d_in, d_out = dims[layer], dims[layer + 1]
        key, k1, k2 = jax.random.split(key, 3)
        scale = jnp.sqrt(6.0 / (d_in + d_out))
        w_l = jax.random.uniform(k1, (d_out, d_in), jnp.float32, -scale, scale)
        w_r = jax.random.uniform(k2, (d_out, d_in), jnp.float32, -scale, scale)
        b = jnp.zeros((d_out,), jnp.float32)
        params.append((w_l, w_r, b))
    return params


def prepare_params(params):
    """One-time prep: transpose, lane-pad and cast weights to bf16."""
    prepped = []
    for w_l, w_r, b in params:
        d_out, d_in = w_l.shape
        d_in_pad, d_out_pad = _pad_dim(d_in), _pad_dim(d_out)
        wl_t = jnp.zeros((d_in_pad, d_out_pad), jnp.float32)
        wl_t = wl_t.at[:d_in, :d_out].set(w_l.T)
        wr_t = jnp.zeros((d_in_pad, d_out_pad), jnp.float32)
        wr_t = wr_t.at[:d_in, :d_out].set(w_r.T)
        bias = jnp.zeros((1, d_out_pad), jnp.float32).at[0, :d_out].set(b)
        prepped.append((wl_t.astype(jnp.bfloat16), wr_t.astype(jnp.bfloat16),
                        bias, d_in, d_out))
    return prepped


def graphsage_forward(x, edge_index, prepped_params):
    """GraphSAGE forward (inference: dropout = identity)."""
    n, d_in0 = x.shape
    n_pad, tm, tk = _choose_tiles(n)

    adj_i8, inv_deg = build_adjacency(edge_index, n_pad)

    d_in0_pad = _pad_dim(d_in0)
    h = jnp.zeros((n_pad, d_in0_pad), jnp.bfloat16)
    h = h.at[:n, :d_in0].set(x.astype(jnp.bfloat16))

    num_layers = len(prepped_params)
    for li, (wl_t, wr_t, bias, _d_in, _d_out) in enumerate(prepped_params):
        last = li == num_layers - 1
        h = sage_layer(
            adj_i8, inv_deg, h, wl_t, wr_t, bias,
            tm=tm, tk=tk,
            apply_relu=not last,
            out_dtype=jnp.float32 if last else jnp.bfloat16,
        )

    d_out_final = prepped_params[-1][4]
    return h[:n, :d_out_final]


def graphsage_reference(x, edge_index, params):
    """Pure-JAX f32 reference for correctness checking."""
    n = x.shape[0]
    src, dst = edge_index[0], edge_index[1]
    a = jnp.zeros((n, n), jnp.float32).at[dst, src].add(1.0)
    a = a / jnp.maximum(a.sum(axis=1, keepdims=True), 1.0)
    h = x
    num_layers = len(params)
    for li, (w_l, w_r, b) in enumerate(params):
        h = (a @ h) @ w_l.T + h @ w_r.T + b
        if li < num_layers - 1:
            h = jnp.maximum(h, 0.0)
    return h


# ----------------------------------- main ----------------------------------- #
if __name__ == "__main__":
    num_nodes = 64
    input_dim = 32
    hidden_dim = 32
    output_dim = 16
    num_layers = 2
    num_edges = 256

    key = jax.random.PRNGKey(0)
    k_x, k_e, k_p = jax.random.split(key, 3)

    x = jax.random.normal(k_x, (num_nodes, input_dim), jnp.float32)
    edge_index = jax.random.randint(k_e, (2, num_edges), 0, num_nodes, jnp.int32)

    params = init_params(k_p, input_dim, hidden_dim, output_dim, num_layers)
    prepped = prepare_params(params)

    out = graphsage_forward(x, edge_index, prepped)
    out = jax.block_until_ready(out)

    assert out.shape == (num_nodes, output_dim)
    assert jnp.all(jnp.isfinite(out))

    # Loose tolerance: inputs / weights are bf16 on the MXU (A counts are
    # exact int8 and 1/deg is applied in f32).
    ref = graphsage_reference(x, edge_index, params)
    max_err = float(jnp.max(jnp.abs(out - ref)))
    assert max_err < 0.3, f"max abs error {max_err} vs f32 reference"

    print("KERNEL_OK")
</pallas_src>

<mosaic_0001>
module attributes {stable_mosaic.version = 11 : i64} {
  func.func @sage_layer_kernel(%arg0: i32, %arg1: i32, %arg2: memref<64x128xi8, #tpu.memory_space<vmem>>, %arg3: memref<64x1xf32, #tpu.memory_space<vmem>>, %arg4: memref<128x128xbf16, #tpu.memory_space<vmem>>, %arg5: memref<64x128xbf16, #tpu.memory_space<vmem>>, %arg6: memref<128x128xbf16, #tpu.memory_space<vmem>>, %arg7: memref<128x128xbf16, #tpu.memory_space<vmem>>, %arg8: memref<1x128xf32, #tpu.memory_space<vmem>>, %arg9: memref<64x128xbf16, #tpu.memory_space<vmem>>, %arg10: memref<64x128xf32, #tpu.memory_space<vmem>>) attributes {dimension_semantics = [#tpu.dimension_semantics<parallel>, #tpu.dimension_semantics<arbitrary>], iteration_bounds = array<i64: 2, 1>, scalar_prefetch = 0 : i64, scratch_operands = 1 : i64, tpu.core_type = #tpu.core_type<tc>, window_params = [{transform_indices = @transform_0, window_bounds = array<i64: 64, 128>}, {transform_indices = @transform_1, window_bounds = array<i64: 64, 1>}, {transform_indices = @transform_2, window_bounds = array<i64: 128, 128>}, {transform_indices = @transform_3, window_bounds = array<i64: 64, 128>}, {pipeline_mode = #tpu.pipeline_mode<synchronous>, transform_indices = @transform_4, window_bounds = array<i64: 128, 128>}, {pipeline_mode = #tpu.pipeline_mode<synchronous>, transform_indices = @transform_5, window_bounds = array<i64: 128, 128>}, {pipeline_mode = #tpu.pipeline_mode<synchronous>, transform_indices = @transform_6, window_bounds = array<i64: 1, 128>}, {transform_indices = @transform_7, window_bounds = array<i64: 64, 128>}]} {
    %c0_i32 = arith.constant 0 : i32
    %0 = arith.cmpi eq, %arg1, %c0_i32 : i32
    %1 = arith.extui %0 : i1 to i32
    %c0_i32_0 = arith.constant 0 : i32
    %2 = arith.cmpi ne, %1, %c0_i32_0 : i32
    scf.if %2 {
      %cst_10 = arith.constant 0.000000e+00 : f32
      %13 = vector.broadcast %cst_10 : f32 to vector<64x128xf32>
      %c0_11 = arith.constant 0 : index
      %c0_12 = arith.constant 0 : index
      %14 = vector.load %arg10[%c0_11, %c0_12] : memref<64x128xf32, #tpu.memory_space<vmem>>, vector<64x128xf32>
      tpu.vector_store %arg10[%c0_11, %c0_12], %13 {strides = array<i32>} : memref<64x128xf32, #tpu.memory_space<vmem>>, vector<64x128xf32>,
    } else {
    }
    %c0 = arith.constant 0 : index
    %c0_1 = arith.constant 0 : index
    %3 = vector.load %arg2[%c0, %c0_1] : memref<64x128xi8, #tpu.memory_space<vmem>>, vector<64x128xi8>
    %4 = arith.sitofp %3 : vector<64x128xi8> to vector<64x128xbf16>
    %c0_2 = arith.constant 0 : index
    %c0_3 = arith.constant 0 : index
    %5 = vector.load %arg10[%c0_2, %c0_3] : memref<64x128xf32, #tpu.memory_space<vmem>>, vector<64x128xf32>
    %c0_4 = arith.constant 0 : index
    %c0_5 = arith.constant 0 : index
    %6 = vector.load %arg4[%c0_4, %c0_5] : memref<128x128xbf16, #tpu.memory_space<vmem>>, vector<128x128xbf16>
    %cst = arith.constant dense<0.000000e+00> : vector<64x128xf32>
    %7 = tpu.matmul %4, %6, %cst {dimension_numbers = #tpu.dot_dimension_numbers<[1], [0], [0], [1], [0, 0, 1, 1], [], []>} : vector<64x128xbf16>, vector<128x128xbf16>, vector<64x128xf32> -> vector<64x128xf32>
    %8 = arith.addf %5, %7 : vector<64x128xf32>
    %c0_6 = arith.constant 0 : index
    %c0_7 = arith.constant 0 : index
    %9 = vector.load %arg10[%c0_6, %c0_7] : memref<64x128xf32, #tpu.memory_space<vmem>>, vector<64x128xf32>
    tpu.vector_store %arg10[%c0_6, %c0_7], %8 {strides = array<i32>} : memref<64x128xf32, #tpu.memory_space<vmem>>, vector<64x128xf32>,
    %c0_i32_8 = arith.constant 0 : i32
    %10 = arith.cmpi eq, %arg1, %c0_i32_8 : i32
    %11 = arith.extui %10 : i1 to i32
    %c0_i32_9 = arith.constant 0 : i32
    %12 = arith.cmpi ne, %11, %c0_i32_9 : i32
    scf.if %12 {
      %c0_10 = arith.constant 0 : index
      %c0_11 = arith.constant 0 : index
      %13 = vector.load %arg10[%c0_10, %c0_11] : memref<64x128xf32, #tpu.memory_space<vmem>>, vector<64x128xf32>
      %c0_12 = arith.constant 0 : index
      %c0_13 = arith.constant 0 : index
      %14 = vector.load %arg3[%c0_12, %c0_13] : memref<64x1xf32, #tpu.memory_space<vmem>>, vector<64x1xf32>
      %15 = vector.broadcast %14 : vector<64x1xf32> to vector<64x128xf32>
      %16 = arith.mulf %13, %15 : vector<64x128xf32>
      %17 = arith.truncf %16 : vector<64x128xf32> to vector<64x128xbf16>
      %c0_14 = arith.constant 0 : index
      %c0_15 = arith.constant 0 : index
      %18 = vector.load %arg6[%c0_14, %c0_15] : memref<128x128xbf16, #tpu.memory_space<vmem>>, vector<128x128xbf16>
      %cst_16 = arith.constant dense<0.000000e+00> : vector<64x128xf32>
      %19 = tpu.matmul %17, %18, %cst_16 {dimension_numbers = #tpu.dot_dimension_numbers<[1], [0], [0], [1], [0, 0, 1, 1], [], []>} : vector<64x128xbf16>, vector<128x128xbf16>, vector<64x128xf32> -> vector<64x128xf32>
      %c0_17 = arith.constant 0 : index
      %c0_18 = arith.constant 0 : index
      %20 = vector.load %arg5[%c0_17, %c0_18] : memref<64x128xbf16, #tpu.memory_space<vmem>>, vector<64x128xbf16>
      %c0_19 = arith.constant 0 : index
      %c0_20 = arith.constant 0 : index
      %21 = vector.load %arg7[%c0_19, %c0_20] : memref<128x128xbf16, #tpu.memory_space<vmem>>, vector<128x128xbf16>
      %cst_21 = arith.constant dense<0.000000e+00> : vector<64x128xf32>
      %22 = tpu.matmul %20, %21, %cst_21 {dimension_numbers = #tpu.dot_dimension_numbers<[1], [0], [0], [1], [0, 0, 1, 1], [], []>} : vector<64x128xbf16>, vector<128x128xbf16>, vector<64x128xf32> -> vector<64x128xf32>
      %23 = arith.addf %19, %22 : vector<64x128xf32>
      %c0_22 = arith.constant 0 : index
      %c0_23 = arith.constant 0 : index
      %24 = vector.load %arg8[%c0_22, %c0_23] : memref<1x128xf32, #tpu.memory_space<vmem>>, vector<1x128xf32>
      %25 = vector.broadcast %24 : vector<1x128xf32> to vector<64x128xf32>
      %26 = arith.addf %23, %25 : vector<64x128xf32>
      %cst_24 = arith.constant 0.000000e+00 : f32
      %27 = vector.broadcast %cst_24 : f32 to vector<64x128xf32>
      %28 = arith.maximumf %26, %27 : vector<64x128xf32>
      %29 = arith.truncf %28 : vector<64x128xf32> to vector<64x128xbf16>
      %c0_25 = arith.constant 0 : index
      %c0_26 = arith.constant 0 : index
      %30 = vector.load %arg9[%c0_25, %c0_26] : memref<64x128xbf16, #tpu.memory_space<vmem>>, vector<64x128xbf16>
      tpu.vector_store %arg9[%c0_25, %c0_26], %29 {strides = array<i32>} : memref<64x128xbf16, #tpu.memory_space<vmem>>, vector<64x128xbf16>,
    } else {
    }
    return
  }
  func.func @transform_0(%arg0: i32, %arg1: i32) -> (i32, i32) {
    %c0_i32 = arith.constant 0 : i32
    return %arg0, %arg1 : i32, i32
  }
  func.func @transform_1(%arg0: i32, %arg1: i32) -> (i32, i32) {
    %c0_i32 = arith.constant 0 : i32
    %c0_i32_0 = arith.constant 0 : i32
    return %arg0, %c0_i32 : i32, i32
  }
  func.func @transform_2(%arg0: i32, %arg1: i32) -> (i32, i32) {
    %c0_i32 = arith.constant 0 : i32
    %c0_i32_0 = arith.constant 0 : i32
    return %arg1, %c0_i32 : i32, i32
  }
  func.func @transform_3(%arg0: i32, %arg1: i32) -> (i32, i32) {
    %c0_i32 = arith.constant 0 : i32
    %c0_i32_0 = arith.constant 0 : i32
    return %arg0, %c0_i32 : i32, i32
  }
  func.func @transform_4(%arg0: i32, %arg1: i32) -> (i32, i32) {
    %c0_i32 = arith.constant 0 : i32
    %c0_i32_0 = arith.constant 0 : i32
    %c0_i32_1 = arith.constant 0 : i32
    return %c0_i32, %c0_i32_0 : i32, i32
  }
  func.func @transform_5(%arg0: i32, %arg1: i32) -> (i32, i32) {
    %c0_i32 = arith.constant 0 : i32
    %c0_i32_0 = arith.constant 0 : i32
    %c0_i32_1 = arith.constant 0 : i32
    return %c0_i32, %c0_i32_0 : i32, i32
  }
  func.func @transform_6(%arg0: i32, %arg1: i32) -> (i32, i32) {
    %c0_i32 = arith.constant 0 : i32
    %c0_i32_0 = arith.constant 0 : i32
    %c0_i32_1 = arith.constant 0 : i32
    return %c0_i32, %c0_i32_0 : i32, i32
  }
  func.func @transform_7(%arg0: i32, %arg1: i32) -> (i32, i32) {
    %c0_i32 = arith.constant 0 : i32
    %c0_i32_0 = arith.constant 0 : i32
    return %arg0, %c0_i32 : i32, i32
  }
}

</mosaic_0001>

<llo_original>
// kernel: tpu_custom_call.1
$region0: #{tpu_custom_call.1}
  #allocation0 [shape = 'u32[]', space=smem, size = 0x4, offset = 0x4, fixed_abs, tag = 'smem constant byte address 0x4 - core index']
  #allocation1 [shape = 'u32[72,128]{1,0:T(1,128)}', space=vmem, size = 0x9000, scoped, tag = 'internal scratch']
  #allocation2 [shape = 'f32[64,128]{1,0:T(8,128)}', space=vmem, size = 0x8000, scoped, tag = 'scratch operand']
  %s0 = inlined_call_operand.hbm [shape: s8[128,128], index: 0, kind: input, shape index: {}]
  %s1 = inlined_call_operand.vmem [shape: f32[128,1], index: 1, kind: input, shape index: {}]
  %s2 = inlined_call_operand.vmem [shape: bf16[128,128], index: 2, kind: input, shape index: {}]
  %s3 = inlined_call_operand.vmem [shape: bf16[128,128], index: 3, kind: input, shape index: {}]
  %s4 = inlined_call_operand.hbm [shape: bf16[128,128], index: 4, kind: input, shape index: {}]
  %s5 = inlined_call_operand.hbm [shape: bf16[128,128], index: 5, kind: input, shape index: {}]
  %s6 = inlined_call_operand.vmem [shape: f32[1,128], index: 6, kind: input, shape index: {}]
  %s7 = inlined_call_operand.hbm [shape: bf16[128,128], index: 7, kind: output, shape index: {}]
  %s8 = sld [smem:[#allocation0]]
  $region81: #{tpu_custom_call.1} parent=0
    _
  %s10 = ssub.s32 1, %s8
  %s11 = scalar_select 0, %s10, %s8
  $region1: #{tpu_custom_call.1} parent=0
    #allocation3 [shape = 'u8[16384]{0}', space=vmem, size = 0x4000, scoped, tag = 'input window, operand 0']
    #allocation4 [shape = 's32[2]{0}', space=sflag, size = 0x8, scoped, tag = 'scoped memory for tpu_custom_call.1']
    #allocation5 [shape = 's32[2]{0}', space=sflag, size = 0x8, scoped, tag = 'scoped memory for tpu_custom_call.1']
    #allocation6 [shape = 'u8[32768]{0}', space=vmem, size = 0x8000, scoped, tag = 'input window, operand 4, single buffered']
    #allocation7 [shape = 's32[1]{0}', space=sflag, size = 0x4, scoped, tag = 'scoped memory for tpu_custom_call.1']
    #allocation8 [shape = 'u8[32768]{0}', space=vmem, size = 0x8000, scoped, tag = 'input window, operand 5, single buffered']
    #allocation9 [shape = 'u8[32768]{0}', space=vmem, size = 0x8000, scoped, tag = 'output window, operand 0']
    %12 = vsyncpa [#allocation4], 0
    %s13 = scalar_lea.sflag [#allocation4], 1
    %14 = vsyncpa %s13, 0
    %15 = vsyncpa [#allocation7], 0
    %16 = vsyncpa [#allocation5], 0
    %s17 = scalar_lea.sflag [#allocation5], 1
    %18 = vsyncpa %s17, 0
    loop: start=0, step=1, limit=4
    $region2: #{tpu_custom_call.1} parent=1 // loop_pre_header
      _
    $region3: #{tpu_custom_call.1} parent=1 // loop_header
      %s20 = sphi 0, %s24
      %p21 = scmp.ge.s32.totalorder %s20, 4
      %s27 = sphi 0, %s39
      %s28 = sphi 0, %s35
      %s29 = sphi 0, %s27
      %s30 = sphi 0, %s28
      %s31 = sphi 0, %s29
      %s32 = sphi 0, %s30
      %s44 = sphi 0, %s46
      %s47 = sphi 0, %s44
      %s48 = sphi 0, %s47
      %s64 = sphi 0, %s48
      %s70 = sphi 0, %s72
      %s73 = sphi 0, %s70
      %s74 = sphi 0, %s73
      %s90 = sphi 0, %s74
      %s96 = sphi 0, %s98
      %s99 = sphi 0, %s96
      %s100 = sphi 0, %s99
      %s116 = sphi 0, %s100
      %s122 = sphi 0, %s124
      %s125 = sphi 0, %s122
      %s126 = sphi 0, %s125
      %s142 = sphi 0, %s126
      %s146 = sphi 0, %s146
      %s148 = sphi 0, %s146
      %s149 = sphi 0, %s148
      %s163 = sphi 0, %s149
      %s167 = sphi 0, %s167
      %s169 = sphi 0, %s167
      %s170 = sphi 0, %s169
      %s184 = sphi 0, %s170
      %s188 = sphi 0, %s188
      %s190 = sphi 0, %s188
      %s191 = sphi 0, %s190
      %s205 = sphi 0, %s191
      %s211 = sphi 0, %s213
      %s214 = sphi 0, %s211
      %s215 = sphi 0, %s214
      %s231 = sphi 0, %s215
    $region4: #{tpu_custom_call.1} parent=1 // loop_header_branch
      %23 = sbr.rel (%p21) target = $region8
    $region5: #{tpu_custom_call.1} parent=1 // loop_body
      %s25 = ssub.s32 %s20, 1
      %s26 = ssub.s32 %s20, 2
      %s33 = sadd.s32 1, %s28
      %p34 = scmp.ge.s32.totalorder %s33, 1
      %s35 = scalar_select %p34, 0, %s33
      %s36 = sadd.s32 1, %s27
      %s37 = scalar_select %p34, %s36, %s27
      %p38 = scmp.ge.s32.totalorder %s37, 2
      %s39 = scalar_select %p38, 0, %s37
      %s40 = ssub.s32 %s27, %s39
      %s41 = ssub.s32 %s28, %s35
      %s42 = sor.u32 %s40, %s41
      %p43 = scmp.eq.s32.totalorder %s42, 0
      %s45 = sadd.s32 %s44, 1
      %s46 = scalar_select %p43, %s44, %s45
      %p49 = pneg %p43
      %p50 = scmp.eq.s32.totalorder %s20, 1
      %p51 = por %p49, %p50
      %p52 = scmp.ne.s32.totalorder %s44, %s47
      %p53 = scmp.eq.s32.totalorder %s20, 0
      %p54 = por %p52, %p53
      %p55 = scmp.ne.s32.totalorder %s44, %s47
      %p56 = scmp.eq.s32.totalorder %s25, 1
      %p57 = por %p55, %p56
      %p58 = scmp.ne.s32.totalorder %s47, %s48
      %p59 = scmp.eq.s32.totalorder %s25, 0
      %p60 = por %p58, %p59
      %p61 = scmp.ne.s32.totalorder %s47, %s48
      %p62 = scmp.eq.s32.totalorder %s26, 1
      %p63 = por %p61, %p62
      %p65 = scmp.ne.s32.totalorder %s48, %s64
      %p66 = scmp.eq.s32.totalorder %s26, 0
      %p67 = por %p65, %p66
      %s68 = ssub.s32 %s27, %s39
      %p69 = scmp.eq.s32.totalorder %s68, 0
      %s71 = sadd.s32 %s70, 1
      %s72 = scalar_select %p69, %s70, %s71
      %p75 = pneg %p69
      %p76 = scmp.eq.s32.totalorder %s20, 1
      %p77 = por %p75, %p76
      %p78 = scmp.ne.s32.totalorder %s70, %s73
      %p79 = scmp.eq.s32.totalorder %s20, 0
      %p80 = por %p78, %p79
      %p81 = scmp.ne.s32.totalorder %s70, %s73
      %p82 = scmp.eq.s32.totalorder %s25, 1
      %p83 = por %p81, %p82
      %p84 = scmp.ne.s32.totalorder %s73, %s74
      %p85 = scmp.eq.s32.totalorder %s25, 0
      %p86 = por %p84, %p85
      %p87 = scmp.ne.s32.totalorder %s73, %s74
      %p88 = scmp.eq.s32.totalorder %s26, 1
      %p89 = por %p87, %p88
      %p91 = scmp.ne.s32.totalorder %s74, %s90
      %p92 = scmp.eq.s32.totalorder %s26, 0
      %p93 = por %p91, %p92
      %s94 = ssub.s32 %s28, %s35
      %p95 = scmp.eq.s32.totalorder %s94, 0
      %s97 = sadd.s32 %s96, 1
      %s98 = scalar_select %p95, %s96, %s97
      %p101 = pneg %p95
      %p102 = scmp.eq.s32.totalorder %s20, 1
      %p103 = por %p101, %p102
      %p104 = scmp.ne.s32.totalorder %s96, %s99
      %p105 = scmp.eq.s32.totalorder %s20, 0
      %p106 = por %p104, %p105
      %p107 = scmp.ne.s32.totalorder %s96, %s99
      %p108 = scmp.eq.s32.totalorder %s25, 1
      %p109 = por %p107, %p108
      %p110 = scmp.ne.s32.totalorder %s99, %s100
      %p111 = scmp.eq.s32.totalorder %s25, 0
      %p112 = por %p110, %p111
      %p113 = scmp.ne.s32.totalorder %s99, %s100
      %p114 = scmp.eq.s32.totalorder %s26, 1
      %p115 = por %p113, %p114
      %p117 = scmp.ne.s32.totalorder %s100, %s116
      %p118 = scmp.eq.s32.totalorder %s26, 0
      %p119 = por %p117, %p118
      %s120 = ssub.s32 %s27, %s39
      %p121 = scmp.eq.s32.totalorder %s120, 0
      %s123 = sadd.s32 %s122, 1
      %s124 = scalar_select %p121, %s122, %s123
      %p127 = pneg %p121
      %p128 = scmp.eq.s32.totalorder %s20, 1
      %p129 = por %p127, %p128
      %p130 = scmp.ne.s32.totalorder %s122, %s125
      %p131 = scmp.eq.s32.totalorder %s20, 0
      %p132 = por %p130, %p131
      %p133 = scmp.ne.s32.totalorder %s122, %s125
      %p134 = scmp.eq.s32.totalorder %s25, 1
      %p135 = por %p133, %p134
      %p136 = scmp.ne.s32.totalorder %s125, %s126
      %p137 = scmp.eq.s32.totalorder %s25, 0
      %p138 = por %p136, %p137
      %p139 = scmp.ne.s32.totalorder %s125, %s126
      %p140 = scmp.eq.s32.totalorder %s26, 1
      %p141 = por %p139, %p140
      %p143 = scmp.ne.s32.totalorder %s126, %s142
      %p144 = scmp.eq.s32.totalorder %s26, 0
      %p145 = por %p143, %p144
      %s147 = sadd.s32 %s146, 1
      %p150 = scmp.eq.s32.totalorder %s20, 1
      %p151 = scmp.ne.s32.totalorder %s146, %s148
      %p152 = scmp.eq.s32.totalorder %s20, 0
      %p153 = por %p151, %p152
      %p154 = scmp.ne.s32.totalorder %s146, %s148
      %p155 = scmp.eq.s32.totalorder %s25, 1
      %p156 = por %p154, %p155
      %p157 = scmp.ne.s32.totalorder %s148, %s149
      %p158 = scmp.eq.s32.totalorder %s25, 0
      %p159 = por %p157, %p158
      %p160 = scmp.ne.s32.totalorder %s148, %s149
      %p161 = scmp.eq.s32.totalorder %s26, 1
      %p162 = por %p160, %p161
      %p164 = scmp.ne.s32.totalorder %s149, %s163
      %p165 = scmp.eq.s32.totalorder %s26, 0
      %p166 = por %p164, %p165
      %s168 = sadd.s32 %s167, 1
      %p171 = scmp.eq.s32.totalorder %s20, 1
      %p172 = scmp.ne.s32.totalorder %s167, %s169
      %p173 = scmp.eq.s32.totalorder %s20, 0
      %p174 = por %p172, %p173
      %p175 = scmp.ne.s32.totalorder %s167, %s169
      %p176 = scmp.eq.s32.totalorder %s25, 1
      %p177 = por %p175, %p176
      %p178 = scmp.ne.s32.totalorder %s169, %s170
      %p179 = scmp.eq.s32.totalorder %s25, 0
      %p180 = por %p178, %p179
      %p181 = scmp.ne.s32.totalorder %s169, %s170
      %p182 = scmp.eq.s32.totalorder %s26, 1
      %p183 = por %p181, %p182
      %p185 = scmp.ne.s32.totalorder %s170, %s184
      %p186 = scmp.eq.s32.totalorder %s26, 0
      %p187 = por %p185, %p186
      %s189 = sadd.s32 %s188, 1
      %p192 = scmp.eq.s32.totalorder %s20, 1
      %p193 = scmp.ne.s32.totalorder %s188, %s190
      %p194 = scmp.eq.s32.totalorder %s20, 0
      %p195 = por %p193, %p194
      %p196 = scmp.ne.s32.totalorder %s188, %s190
      %p197 = scmp.eq.s32.totalorder %s25, 1
      %p198 = por %p196, %p197
      %p199 = scmp.ne.s32.totalorder %s190, %s191
      %p200 = scmp.eq.s32.totalorder %s25, 0
      %p201 = por %p199, %p200
      %p202 = scmp.ne.s32.totalorder %s190, %s191
      %p203 = scmp.eq.s32.totalorder %s26, 1
      %p204 = por %p202, %p203
      %p206 = scmp.ne.s32.totalorder %s191, %s205
      %p207 = scmp.eq.s32.totalorder %s26, 0
      %p208 = por %p206, %p207
      %s209 = ssub.s32 %s27, %s39
      %p210 = scmp.eq.s32.totalorder %s209, 0
      %s212 = sadd.s32 %s211, 1
      %s213 = scalar_select %p210, %s211, %s212
      %p216 = pneg %p210
      %p217 = scmp.eq.s32.totalorder %s20, 1
      %p218 = por %p216, %p217
      %p219 = scmp.ne.s32.totalorder %s211, %s214
      %p220 = scmp.eq.s32.totalorder %s20, 0
      %p221 = por %p219, %p220
      %p222 = scmp.ne.s32.totalorder %s211, %s214
      %p223 = scmp.eq.s32.totalorder %s25, 1
      %p224 = por %p222, %p223
      %p225 = scmp.ne.s32.totalorder %s214, %s215
      %p226 = scmp.eq.s32.totalorder %s25, 0
      %p227 = por %p225, %p226
      %p228 = scmp.ne.s32.totalorder %s214, %s215
      %p229 = scmp.eq.s32.totalorder %s26, 1
      %p230 = por %p228, %p229
      %p232 = scmp.ne.s32.totalorder %s215, %s231
      %p233 = scmp.eq.s32.totalorder %s26, 0
      %p234 = por %p232, %p233
      %p235 = scmp.le.s32.totalorder 1, %s20
      %p236 = scmp.lt.s32.totalorder %s20, 3
      %p237 = pnand %p235, %p236
      %p238 = pneg %p237
      // Predicated region
      $region9: #{tpu_custom_call.1} parent=5 // pred_check
        _
      $region10: #{tpu_custom_call.1} parent=5 // pred_check_branch
        %240 = sbr.rel (%p237) target = $region12
      $region11: #{tpu_custom_call.1} parent=5 // pred_region
        %s241 = ssub.s32 %s20, 1
        // Predicated region
        $region13: #{tpu_custom_call.1} parent=11 // pred_check
          %p242 = pneg %p112
        $region14: #{tpu_custom_call.1} parent=11 // pred_check_branch
          %244 = sbr.rel (%p242) target = $region16
        $region15: #{tpu_custom_call.1} parent=11 // pred_region
          %s245 = smul.u32 16, %s30
          %p246 = scmp.lt.s32.totalorder %s245, 15
          %s247 = scalar_select %p246, %s245, 15
          %s248 = smul.addr %s247, 4
          %s249 = scalar_lea.vmem %s2, %s248
          %s250 = smul.u32 16, %s30
        $region16: #{tpu_custom_call.1} parent=11 // pred_fallthru
          _
        // Predicated region
        $region17: #{tpu_custom_call.1} parent=11 // pred_check
          %p251 = pneg %p159
        $region18: #{tpu_custom_call.1} parent=11 // pred_check_branch
          %253 = sbr.rel (%p251) target = $region20
        $region19: #{tpu_custom_call.1} parent=11 // pred_region
          %255 = vsyncadd [#allocation7], 0
          %s256 = sshll.u32 %s4, 4
          %s257 = int_to_ptr.hbm [resolvable:$true] %s256
          %s258 = sshll.u32 [#allocation6], 4
          %s259 = int_to_ptr.vmem [resolvable:$true] %s258
          %264 = dma.hbm_to_vmem [thread:$0]  %s257, 1024, %s259, [#allocation7], 64, 64, 4
        $region20: #{tpu_custom_call.1} parent=11 // pred_fallthru
          _
        // Predicated region
        $region21: #{tpu_custom_call.1} parent=11 // pred_check
          %p265 = pneg %p180
        $region22: #{tpu_custom_call.1} parent=11 // pred_check_branch
          %267 = sbr.rel (%p265) target = $region24
        $region23: #{tpu_custom_call.1} parent=11 // pred_region
          %269 = vsyncadd [#allocation7], 0
          %s270 = sshll.u32 %s5, 4
          %s271 = int_to_ptr.hbm [resolvable:$true] %s270
          %s272 = sshll.u32 [#allocation8], 4
          %s273 = int_to_ptr.vmem [resolvable:$true] %s272
          %278 = dma.hbm_to_vmem [thread:$0]  %s271, 1024, %s273, [#allocation7], 64, 64, 4
        $region24: #{tpu_custom_call.1} parent=11 // pred_fallthru
          _
        // Predicated region
        $region25: #{tpu_custom_call.1} parent=11 // pred_check
          %p279 = pneg %p201
        $region26: #{tpu_custom_call.1} parent=11 // pred_check_branch
          %281 = sbr.rel (%p279) target = $region28
        $region27: #{tpu_custom_call.1} parent=11 // pred_region
          _
        $region28: #{tpu_custom_call.1} parent=11 // pred_fallthru
          _
      $region12: #{tpu_custom_call.1} parent=5 // pred_fallthru
        _
      %p282 = scmp.lt.s32.totalorder %s20, 2
      // Predicated region
      $region29: #{tpu_custom_call.1} parent=5 // pred_check
        %p283 = pneg %p282
      $region30: #{tpu_custom_call.1} parent=5 // pred_check_branch
        %285 = sbr.rel (%p283) target = $region32
      $region31: #{tpu_custom_call.1} parent=5 // pred_region
        // Predicated region
        $region33: #{tpu_custom_call.1} parent=31 // pred_check
          %p286 = pneg %p54
        $region34: #{tpu_custom_call.1} parent=31 // pred_check_branch
          %288 = sbr.rel (%p286) target = $region36
        $region35: #{tpu_custom_call.1} parent=31 // pred_region
          %s289 = sand.u32 %s44, 1
          %s290 = scalar_lea.sflag [#allocation4], %s289
          %s291 = sand.u32 %s44, 1
          %s292 = smul.addr %s291, 16
          %s293 = scalar_lea.vmem [#allocation3], %s292
          %s294 = smul.u32 2, %s27
          %296 = vsyncadd %s290, 0
          %s297 = sadd.s32 %s28, %s294
          %s298 = smul.addr %s297, 8
          %s299 = scalar_lea.hbm %s0, %s298
          %s300 = sshll.u32 %s299, 4
          %s301 = int_to_ptr.hbm [resolvable:$true] %s300
          %s302 = sshll.u32 %s293, 4
          %s303 = int_to_ptr.vmem [resolvable:$true] %s302
          %308 = dma.hbm_to_vmem [thread:$0]  %s301, 256, %s303, %s290, 128, 128, 8
        $region36: #{tpu_custom_call.1} parent=31 // pred_fallthru
          _
        // Predicated region
        $region37: #{tpu_custom_call.1} parent=31 // pred_check
          %p309 = pneg %p80
        $region38: #{tpu_custom_call.1} parent=31 // pred_check_branch
          %311 = sbr.rel (%p309) target = $region40
        $region39: #{tpu_custom_call.1} parent=31 // pred_region
          %s312 = smul.u32 8, %s27
          %p313 = scmp.lt.s32.totalorder %s312, 15
          %s314 = scalar_select %p313, %s312, 15
          %s315 = smul.addr %s314, 8
          %s316 = scalar_lea.vmem %s1, %s315
          %s317 = smul.u32 8, %s27
        $region40: #{tpu_custom_call.1} parent=31 // pred_fallthru
          _
        // Predicated region
        $region41: #{tpu_custom_call.1} parent=31 // pred_check
          %p318 = pneg %p132
        $region42: #{tpu_custom_call.1} parent=31 // pred_check_branch
          %320 = sbr.rel (%p318) target = $region44
        $region43: #{tpu_custom_call.1} parent=31 // pred_region
          %s321 = smul.u32 8, %s27
          %p322 = scmp.lt.s32.totalorder %s321, 15
          %s323 = scalar_select %p322, %s321, 15
          %s324 = smul.addr %s323, 4
          %s325 = scalar_lea.vmem %s3, %s324
          %s326 = smul.u32 8, %s27
        $region44: #{tpu_custom_call.1} parent=31 // pred_fallthru
          _
      $region32: #{tpu_custom_call.1} parent=5 // pred_fallthru
        _
      %p327 = scmp.le.s32.totalorder 1, %s20
      %p328 = scmp.lt.s32.totalorder %s20, 3
      %p329 = pnand %p327, %p328
      %p330 = pneg %p329
      // Predicated region
      $region45: #{tpu_custom_call.1} parent=5 // pred_check
        _
      $region46: #{tpu_custom_call.1} parent=5 // pred_check_branch
        %332 = sbr.rel (%p329) target = $region48
      $region47: #{tpu_custom_call.1} parent=5 // pred_region
        %s333 = ssub.s32 %s20, 1
        %s334 = sand.u32 %s47, 1
        %s335 = scalar_lea.sflag [#allocation4], %s334
        %s336 = sand.u32 %s47, 1
        %s337 = smul.addr %s336, 16
        %s338 = scalar_lea.vmem [#allocation3], %s337
        // Predicated region
        $region49: #{tpu_custom_call.1} parent=47 // pred_check
          %p339 = pneg %p60
        $region50: #{tpu_custom_call.1} parent=47 // pred_check_branch
          %341 = sbr.rel (%p339) target = $region52
        $region51: #{tpu_custom_call.1} parent=47 // pred_region
          %343 = dma.done %s335, 256
        $region52: #{tpu_custom_call.1} parent=47 // pred_fallthru
          _
        // Predicated region
        $region53: #{tpu_custom_call.1} parent=47 // pred_check
          %p344 = pneg %p159
        $region54: #{tpu_custom_call.1} parent=47 // pred_check_branch
          %346 = sbr.rel (%p344) target = $region56
        $region55: #{tpu_custom_call.1} parent=47 // pred_region
          %348 = dma.done [#allocation7], 1024
        $region56: #{tpu_custom_call.1} parent=47 // pred_fallthru
          _
        // Predicated region
        $region57: #{tpu_custom_call.1} parent=47 // pred_check
          %p349 = pneg %p180
        $region58: #{tpu_custom_call.1} parent=47 // pred_check_branch
          %351 = sbr.rel (%p349) target = $region60
        $region59: #{tpu_custom_call.1} parent=47 // pred_region
          %353 = dma.done [#allocation7], 1024
        $region60: #{tpu_custom_call.1} parent=47 // pred_fallthru
          _
        %s354 = sand.u32 %s47, 1
        %s355 = scalar_lea.sflag [#allocation4], %s354
        %s356 = sand.u32 %s47, 1
        %s357 = smul.addr %s356, 16
        %s358 = scalar_lea.vmem [#allocation3], %s357
        %p359 = pneg %p60
        %p360 = pneg %p57
        %s361 = smul.u32 8, %s29
        %p362 = scmp.lt.s32.totalorder %s361, 15
        %s363 = scalar_select %p362, %s361, 15
        %s364 = smul.addr %s363, 8
        %s365 = scalar_lea.vmem %s1, %s364
        %p366 = pneg %p86
        %p367 = pneg %p83
        %s368 = smul.u32 16, %s30
        %p369 = scmp.lt.s32.totalorder %s368, 15
        %s370 = scalar_select %p369, %s368, 15
        %s371 = smul.addr %s370, 4
        %s372 = scalar_lea.vmem %s2, %s371
        %p373 = pneg %p112
        %p374 = pneg %p109
        %s375 = smul.u32 8, %s29
        %p376 = scmp.lt.s32.totalorder %s375, 15
        %s377 = scalar_select %p376, %s375, 15
        %s378 = smul.addr %s377, 4
        %s379 = scalar_lea.vmem %s3, %s378
        %p380 = pneg %p138
        %p381 = pneg %p135
        %p382 = pneg %p159
        %p383 = pneg %p156
        %p384 = pneg %p180
        %p385 = pneg %p177
        %p386 = pneg %p201
        %p387 = pneg %p198
        %p388 = pneg %p227
        %p389 = pneg %p224
        %s390 = sand.u32 %s214, 1
        %s391 = scalar_lea.sflag [#allocation5], %s390
        %s392 = sand.u32 %s214, 1
        %s393 = smul.addr %s392, 32
        %s394 = scalar_lea.vmem [#allocation9], %s393
        %s395 = smul.u32 2, %s29
        %s396 = smul.u32 8, %s29
        %p397 = scmp.lt.s32.totalorder %s396, 15
        %s398 = scalar_select %p397, %s396, 15
        %s399 = smul.addr %s398, 8
        %s400 = scalar_lea.vmem %s1, %s399
        %s401 = smul.u32 8, %s29
        %s402 = smul.u32 16, %s30
        %p403 = scmp.lt.s32.totalorder %s402, 15
        %s404 = scalar_select %p403, %s402, 15
        %s405 = smul.addr %s404, 4
        %s406 = scalar_lea.vmem %s2, %s405
        %s407 = smul.u32 16, %s30
        %s408 = smul.u32 8, %s29
        %p409 = scmp.lt.s32.totalorder %s408, 15
        %s410 = scalar_select %p409, %s408, 15
        %s411 = smul.addr %s410, 4
        %s412 = scalar_lea.vmem %s3, %s411
        %s413 = smul.u32 8, %s29
        %s414 = smul.u32 8, %s29
        %p415 = scmp.eq.s32.totalorder %s30, 0
        // Predicated region
        $region61: #{tpu_custom_call.1} parent=47 // pred_check
          %p416 = pneg %p415
        $region62: #{tpu_custom_call.1} parent=47 // pred_check_branch
          %418 = sbr.rel (%p416) target = $region64
        $region63: #{tpu_custom_call.1} parent=47 // pred_region
          %419 = vst [vmem:[#allocation2] sm:$0xff] 0.0
          %420 = vst [vmem:[#allocation2 + $0x8] sm:$0xff] 0.0
          %421 = vst [vmem:[#allocation2 + $0x10] sm:$0xff] 0.0
          %422 = vst [vmem:[#allocation2 + $0x18] sm:$0xff] 0.0
          %423 = vst [vmem:[#allocation2 + $0x20] sm:$0xff] 0.0
          %424 = vst [vmem:[#allocation2 + $0x28] sm:$0xff] 0.0
          %425 = vst [vmem:[#allocation2 + $0x30] sm:$0xff] 0.0
          %426 = vst [vmem:[#allocation2 + $0x38] sm:$0xff] 0.0
        $region64: #{tpu_custom_call.1} parent=47 // pred_fallthru
          _
        %v427 = vld [vmem:[%s338] sm:$0xff]
        %v428 = vld [vmem:[%s338 + $0x8] sm:$0xff]
        %v429 = vunpack.c.0.s8 %v427
        %v430 = vunpack.c.1.s8 %v427
        %v431 = vunpack.c.2.s8 %v427
        %v432 = vunpack.c.3.s8 %v427
        %v433 = vunpack.c.0.s8 %v428
        %v434 = vunpack.c.1.s8 %v428
        %v435 = vunpack.c.2.s8 %v428
        %v436 = vunpack.c.3.s8 %v428
        %v437 = vcvt.s32.f32 %v429
        %v438 = vcvt.s32.f32 %v430
        %v439 = vcvt.s32.f32 %v431
        %v440 = vcvt.s32.f32 %v432
        %v441 = vcvt.s32.f32 %v433
        %v442 = vcvt.s32.f32 %v434
        %v443 = vcvt.s32.f32 %v435
        %v444 = vcvt.s32.f32 %v436
        %v445 = vpack.c.bf16 %v438, %v437
        %v446 = vpack.c.bf16 %v440, %v439
        %v447 = vpack.c.bf16 %v442, %v441
        %v448 = vpack.c.bf16 %v444, %v443
        %v449 = vld [vmem:[#allocation2] sm:$0xff]
        %v450 = vld [vmem:[#allocation2 + $0x8] sm:$0xff]
        %v451 = vld [vmem:[#allocation2 + $0x10] sm:$0xff]
        %v452 = vld [vmem:[#allocation2 + $0x18] sm:$0xff]
        %v453 = vld [vmem:[#allocation2 + $0x20] sm:$0xff]
        %v454 = vld [vmem:[#allocation2 + $0x28] sm:$0xff]
        %v455 = vld [vmem:[#allocation2 + $0x30] sm:$0xff]
        %v456 = vld [vmem:[#allocation2 + $0x38] sm:$0xff]
        %v457 = vld [vmem:[%s406] sm:$0xf]
        %v458 = vld [vmem:[%s406 + $0x4] sm:$0xf]
        %v459 = vld [vmem:[%s406 + $0x8] sm:$0xf]
        %v460 = vld [vmem:[%s406 + $0xc] sm:$0xf]
        %v461 = vld [vmem:[%s406 + $0x10] sm:$0xf]
        %v462 = vld [vmem:[%s406 + $0x14] sm:$0xf]
        %v463 = vld [vmem:[%s406 + $0x18] sm:$0xf]
        %v464 = vld [vmem:[%s406 + $0x1c] sm:$0xf]
        %v465 = vld [vmem:[%s406 + $0x20] sm:$0xf]
        %v466 = vld [vmem:[%s406 + $0x24] sm:$0xf]
        %v467 = vld [vmem:[%s406 + $0x28] sm:$0xf]
        %v468 = vld [vmem:[%s406 + $0x2c] sm:$0xf]
        %v469 = vld [vmem:[%s406 + $0x30] sm:$0xf]
        %v470 = vld [vmem:[%s406 + $0x34] sm:$0xf]
        %v471 = vld [vmem:[%s406 + $0x38] sm:$0xf]
        %v472 = vld [vmem:[%s406 + $0x3c] sm:$0xf]
        %v489 = vunpack.c.l.b16 %v457
        %v490 = vunpack.c.l.b16 %v458
        %v491 = vunpack.c.l.b16 %v459
        %v492 = vunpack.c.l.b16 %v460
        %v493 = vunpack.c.l.b16 %v461
        %v494 = vunpack.c.l.b16 %v462
        %v495 = vunpack.c.l.b16 %v463
        %v496 = vunpack.c.l.b16 %v464
        %v497 = vunpack.c.l.b16 %v465
        %v498 = vunpack.c.l.b16 %v466
        %v499 = vunpack.c.l.b16 %v467
        %v500 = vunpack.c.l.b16 %v468
        %v501 = vunpack.c.l.b16 %v469
        %v502 = vunpack.c.l.b16 %v470
        %v503 = vunpack.c.l.b16 %v471
        %v504 = vunpack.c.l.b16 %v472
        %v505 = vpack.c.b16 %v490, %v489
        %v506 = vpack.c.b16 %v492, %v491
        %v507 = vpack.c.b16 %v494, %v493
        %v508 = vpack.c.b16 %v496, %v495
        %v509 = vpack.c.b16 %v498, %v497
        %v510 = vpack.c.b16 %v500, %v499
        %v511 = vpack.c.b16 %v502, %v501
        %v512 = vpack.c.b16 %v504, %v503
        %521 = vmatpush.bf16.msra.mxu0 %v512
        %522 = vmatpush.bf16.msra.mxu0 %v511
        %523 = vmatpush.bf16.msra.mxu0 %v510
        %524 = vmatpush.bf16.msra.mxu0 %v509
        %525 = vmatpush.bf16.msra.mxu0 %v508
        %526 = vmatpush.bf16.msra.mxu0 %v507
        %527 = vmatpush.bf16.msra.mxu0 %v506
        %528 = vmatpush.bf16.msra.mxu0 %v505
        %529 = vmatmul.bf16.gmra.mxu0 %v445
        %v530 = vpop.f32.mrf.mxu0
        %v531 = vadd.f32 0.0, %v530
        %v532 = vpop.f32.mrf.mxu0
        %v533 = vadd.f32 0.0, %v532
        %534 = vmatmul.bf16.gmra.mxu0 %v446
        %v535 = vpop.f32.mrf.mxu0
        %v536 = vadd.f32 0.0, %v535
        %v537 = vpop.f32.mrf.mxu0
        %v538 = vadd.f32 0.0, %v537
        %539 = vmatmul.bf16.gmra.mxu0 %v447
        %v540 = vpop.f32.mrf.mxu0
        %v541 = vadd.f32 0.0, %v540
        %v542 = vpop.f32.mrf.mxu0
        %v543 = vadd.f32 0.0, %v542
        %544 = vmatmul.bf16.gmra.mxu0 %v448
        %v545 = vpop.f32.mrf.mxu0
        %v546 = vadd.f32 0.0, %v545
        %v547 = vpop.f32.mrf.mxu0
        %v548 = vadd.f32 0.0, %v547
        %549 = vdwg.mxu0
        %v550 = vadd.f32 %v449, %v531
        %v551 = vadd.f32 %v450, %v533
        %v552 = vadd.f32 %v451, %v536
        %v553 = vadd.f32 %v452, %v538
        %v554 = vadd.f32 %v453, %v541
        %v555 = vadd.f32 %v454, %v543
        %v556 = vadd.f32 %v455, %v546
        %v557 = vadd.f32 %v456, %v548
        %558 = vst [vmem:[#allocation2] sm:$0xff] %v550
        %559 = vst [vmem:[#allocation2 + $0x8] sm:$0xff] %v551
        %560 = vst [vmem:[#allocation2 + $0x10] sm:$0xff] %v552
        %561 = vst [vmem:[#allocation2 + $0x18] sm:$0xff] %v553
        %562 = vst [vmem:[#allocation2 + $0x20] sm:$0xff] %v554
        %563 = vst [vmem:[#allocation2 + $0x28] sm:$0xff] %v555
        %564 = vst [vmem:[#allocation2 + $0x30] sm:$0xff] %v556
        %565 = vst [vmem:[#allocation2 + $0x38] sm:$0xff] %v557
        // Predicated region
        $region65: #{tpu_custom_call.1} parent=47 // pred_check
          %p566 = pneg %p415
        $region66: #{tpu_custom_call.1} parent=47 // pred_check_branch
          %568 = sbr.rel (%p566) target = $region68
        $region67: #{tpu_custom_call.1} parent=47 // pred_region
          %v569 = vld [vmem:[#allocation2] sm:$0xff]
          %v570 = vld [vmem:[#allocation2 + $0x8] sm:$0xff]
          %v571 = vld [vmem:[#allocation2 + $0x10] sm:$0xff]
          %v572 = vld [vmem:[#allocation2 + $0x18] sm:$0xff]
          %v573 = vld [vmem:[#allocation2 + $0x20] sm:$0xff]
          %v574 = vld [vmem:[#allocation2 + $0x28] sm:$0xff]
          %v575 = vld [vmem:[#allocation2 + $0x30] sm:$0xff]
          %v576 = vld [vmem:[#allocation2 + $0x38] sm:$0xff]
          %v577 = vld [vmem:[%s400] sm:$0xff]
          %v578 = vld [vmem:[%s400 + $0x8] sm:$0xff]
          %v579 = vld [vmem:[%s400 + $0x10] sm:$0xff]
          %v580 = vld [vmem:[%s400 + $0x18] sm:$0xff]
          %v581 = vld [vmem:[%s400 + $0x20] sm:$0xff]
          %v582 = vld [vmem:[%s400 + $0x28] sm:$0xff]
          %v583 = vld [vmem:[%s400 + $0x30] sm:$0xff]
          %v584 = vld [vmem:[%s400 + $0x38] sm:$0xff]
          %586 = vset.pattern.permute.xlu0 0
          %587 = vperm.xlu0 %586, %v577
          %v588 = vpop.permute.xlu0 %587
          %591 = vset.pattern.permute.xlu0 0
          %592 = vperm.xlu0 %591, %v578
          %v593 = vpop.permute.xlu0 %592
          %596 = vset.pattern.permute.xlu0 0
          %597 = vperm.xlu0 %596, %v579
          %v598 = vpop.permute.xlu0 %597
          %601 = vset.pattern.permute.xlu0 0
          %602 = vperm.xlu0 %601, %v580
          %v603 = vpop.permute.xlu0 %602
          %606 = vset.pattern.permute.xlu0 0
          %607 = vperm.xlu0 %606, %v581
          %v608 = vpop.permute.xlu0 %607
          %611 = vset.pattern.permute.xlu0 0
          %612 = vperm.xlu0 %611, %v582
          %v613 = vpop.permute.xlu0 %612
          %616 = vset.pattern.permute.xlu0 0
          %617 = vperm.xlu0 %616, %v583
          %v618 = vpop.permute.xlu0 %617
          %621 = vset.pattern.permute.xlu0 0
          %622 = vperm.xlu0 %621, %v584
          %v623 = vpop.permute.xlu0 %622
          %v625 = vmul.f32 %v569, %v588
          %v626 = vmul.f32 %v570, %v593
          %v627 = vmul.f32 %v571, %v598
          %v628 = vmul.f32 %v572, %v603
          %v629 = vmul.f32 %v573, %v608
          %v630 = vmul.f32 %v574, %v613
          %v631 = vmul.f32 %v575, %v618
          %v632 = vmul.f32 %v576, %v623
          %v633 = vpack.c.bf16 %v626, %v625
          %v634 = vpack.c.bf16 %v628, %v627
          %v635 = vpack.c.bf16 %v630, %v629
          %v636 = vpack.c.bf16 %v632, %v631
          %v637 = vld [vmem:[#allocation6] sm:$0xf]
          %v638 = vld [vmem:[#allocation6 + $0x4] sm:$0xf]
          %v639 = vld [vmem:[#allocation6 + $0x8] sm:$0xf]
          %v640 = vld [vmem:[#allocation6 + $0xc] sm:$0xf]
          %v641 = vld [vmem:[#allocation6 + $0x10] sm:$0xf]
          %v642 = vld [vmem:[#allocation6 + $0x14] sm:$0xf]
          %v643 = vld [vmem:[#allocation6 + $0x18] sm:$0xf]
          %v644 = vld [vmem:[#allocation6 + $0x1c] sm:$0xf]
          %v645 = vld [vmem:[#allocation6 + $0x20] sm:$0xf]
          %v646 = vld [vmem:[#allocation6 + $0x24] sm:$0xf]
          %v647 = vld [vmem:[#allocation6 + $0x28] sm:$0xf]
          %v648 = vld [vmem:[#allocation6 + $0x2c] sm:$0xf]
          %v649 = vld [vmem:[#allocation6 + $0x30] sm:$0xf]
          %v650 = vld [vmem:[#allocation6 + $0x34] sm:$0xf]
          %v651 = vld [vmem:[#allocation6 + $0x38] sm:$0xf]
          %v652 = vld [vmem:[#allocation6 + $0x3c] sm:$0xf]
          %v653 = vld [vmem:[%s412] sm:$0xf]
          %v654 = vld [vmem:[%s412 + $0x4] sm:$0xf]
          %v655 = vld [vmem:[%s412 + $0x8] sm:$0xf]
          %v656 = vld [vmem:[%s412 + $0xc] sm:$0xf]
          %v657 = vld [vmem:[%s412 + $0x10] sm:$0xf]
          %v658 = vld [vmem:[%s412 + $0x14] sm:$0xf]
          %v659 = vld [vmem:[%s412 + $0x18] sm:$0xf]
          %v660 = vld [vmem:[%s412 + $0x1c] sm:$0xf]
          %v661 = vld [vmem:[#allocation8] sm:$0xf]
          %v662 = vld [vmem:[#allocation8 + $0x4] sm:$0xf]
          %v663 = vld [vmem:[#allocation8 + $0x8] sm:$0xf]
          %v664 = vld [vmem:[#allocation8 + $0xc] sm:$0xf]
          %v665 = vld [vmem:[#allocation8 + $0x10] sm:$0xf]
          %v666 = vld [vmem:[#allocation8 + $0x14] sm:$0xf]
          %v667 = vld [vmem:[#allocation8 + $0x18] sm:$0xf]
          %v668 = vld [vmem:[#allocation8 + $0x1c] sm:$0xf]
          %v669 = vld [vmem:[#allocation8 + $0x20] sm:$0xf]
          %v670 = vld [vmem:[#allocation8 + $0x24] sm:$0xf]
          %v671 = vld [vmem:[#allocation8 + $0x28] sm:$0xf]
          %v672 = vld [vmem:[#allocation8 + $0x2c] sm:$0xf]
          %v673 = vld [vmem:[#allocation8 + $0x30] sm:$0xf]
          %v674 = vld [vmem:[#allocation8 + $0x34] sm:$0xf]
          %v675 = vld [vmem:[#allocation8 + $0x38] sm:$0xf]
          %v676 = vld [vmem:[#allocation8 + $0x3c] sm:$0xf]
          %v685 = vunpack.c.l.b16 %v653
          %v686 = vunpack.c.l.b16 %v654
          %v687 = vunpack.c.l.b16 %v655
          %v688 = vunpack.c.l.b16 %v656
          %v689 = vunpack.c.l.b16 %v657
          %v690 = vunpack.c.l.b16 %v658
          %v691 = vunpack.c.l.b16 %v659
          %v692 = vunpack.c.l.b16 %v660
          %v693 = vpack.c.b16 %v686, %v685
          %v694 = vpack.c.b16 %v688, %v687
          %v695 = vpack.c.b16 %v690, %v689
          %v696 = vpack.c.b16 %v692, %v691
          %v717 = vunpack.c.l.b16 %v661
          %v718 = vunpack.c.l.b16 %v662
          %v719 = vunpack.c.l.b16 %v663
          %v720 = vunpack.c.l.b16 %v664
          %v721 = vunpack.c.l.b16 %v665
          %v722 = vunpack.c.l.b16 %v666
          %v723 = vunpack.c.l.b16 %v667
          %v724 = vunpack.c.l.b16 %v668
          %v725 = vunpack.c.l.b16 %v669
          %v726 = vunpack.c.l.b16 %v670
          %v727 = vunpack.c.l.b16 %v671
          %v728 = vunpack.c.l.b16 %v672
          %v729 = vunpack.c.l.b16 %v673
          %v730 = vunpack.c.l.b16 %v674
          %v731 = vunpack.c.l.b16 %v675
          %v732 = vunpack.c.l.b16 %v676
          %v733 = vpack.c.b16 %v718, %v717
          %v734 = vpack.c.b16 %v720, %v719
          %v735 = vpack.c.b16 %v722, %v721
          %v736 = vpack.c.b16 %v724, %v723
          %v737 = vpack.c.b16 %v726, %v725
          %v738 = vpack.c.b16 %v728, %v727
          %v739 = vpack.c.b16 %v730, %v729
          %v740 = vpack.c.b16 %v732, %v731
          %749 = vmatpush.bf16.msra.mxu0 %v740
          %750 = vmatpush.bf16.msra.mxu0 %v739
          %751 = vmatpush.bf16.msra.mxu0 %v738
          %752 = vmatpush.bf16.msra.mxu0 %v737
          %753 = vmatpush.bf16.msra.mxu0 %v736
          %754 = vmatpush.bf16.msra.mxu0 %v735
          %755 = vmatpush.bf16.msra.mxu0 %v734
          %756 = vmatpush.bf16.msra.mxu0 %v733
          %757 = vmatmul.bf16.gmra.mxu0 %v693
          %v758 = vpop.f32.mrf.mxu0
          %v759 = vadd.f32 0.0, %v758
          %v760 = vpop.f32.mrf.mxu0
          %v761 = vadd.f32 0.0, %v760
          %762 = vmatmul.bf16.gmra.mxu0 %v694
          %v763 = vpop.f32.mrf.mxu0
          %v764 = vadd.f32 0.0, %v763
          %v765 = vpop.f32.mrf.mxu0
          %v766 = vadd.f32 0.0, %v765
          %767 = vmatmul.bf16.gmra.mxu0 %v695
          %v768 = vpop.f32.mrf.mxu0
          %v769 = vadd.f32 0.0, %v768
          %v770 = vpop.f32.mrf.mxu0
          %v771 = vadd.f32 0.0, %v770
          %772 = vmatmul.bf16.gmra.mxu0 %v696
          %v773 = vpop.f32.mrf.mxu0
          %v774 = vadd.f32 0.0, %v773
          %v775 = vpop.f32.mrf.mxu0
          %v776 = vadd.f32 0.0, %v775
          %777 = vdwg.mxu0
          %v794 = vunpack.c.l.b16 %v637
          %v795 = vunpack.c.l.b16 %v638
          %v796 = vunpack.c.l.b16 %v639
          %v797 = vunpack.c.l.b16 %v640
          %v798 = vunpack.c.l.b16 %v641
          %v799 = vunpack.c.l.b16 %v642
          %v800 = vunpack.c.l.b16 %v643
          %v801 = vunpack.c.l.b16 %v644
          %v802 = vunpack.c.l.b16 %v645
          %v803 = vunpack.c.l.b16 %v646
          %v804 = vunpack.c.l.b16 %v647
          %v805 = vunpack.c.l.b16 %v648
          %v806 = vunpack.c.l.b16 %v649
          %v807 = vunpack.c.l.b16 %v650
          %v808 = vunpack.c.l.b16 %v651
          %v809 = vunpack.c.l.b16 %v652
          %v810 = vpack.c.b16 %v795, %v794
          %v811 = vpack.c.b16 %v797, %v796
          %v812 = vpack.c.b16 %v799, %v798
          %v813 = vpack.c.b16 %v801, %v800
          %v814 = vpack.c.b16 %v803, %v802
          %v815 = vpack.c.b16 %v805, %v804
          %v816 = vpack.c.b16 %v807, %v806
          %v817 = vpack.c.b16 %v809, %v808
          %826 = vmatpush.bf16.msra.mxu0 %v817
          %827 = vmatpush.bf16.msra.mxu0 %v816
          %828 = vmatpush.bf16.msra.mxu0 %v815
          %829 = vmatpush.bf16.msra.mxu0 %v814
          %830 = vmatpush.bf16.msra.mxu0 %v813
          %831 = vmatpush.bf16.msra.mxu0 %v812
          %832 = vmatpush.bf16.msra.mxu0 %v811
          %833 = vmatpush.bf16.msra.mxu0 %v810
          %834 = vmatmul.bf16.gmra.mxu0 %v633
          %v835 = vpop.f32.mrf.mxu0
          %v836 = vadd.f32 %v759, %v835
          %v837 = vpop.f32.mrf.mxu0
          %v838 = vadd.f32 %v761, %v837
          %839 = vmatmul.bf16.gmra.mxu0 %v634
          %v840 = vpop.f32.mrf.mxu0
          %v841 = vadd.f32 %v764, %v840
          %v842 = vpop.f32.mrf.mxu0
          %v843 = vadd.f32 %v766, %v842
          %844 = vmatmul.bf16.gmra.mxu0 %v635
          %v845 = vpop.f32.mrf.mxu0
          %v846 = vadd.f32 %v769, %v845
          %v847 = vpop.f32.mrf.mxu0
          %v848 = vadd.f32 %v771, %v847
          %849 = vmatmul.bf16.gmra.mxu0 %v636
          %v850 = vpop.f32.mrf.mxu0
          %v851 = vadd.f32 %v774, %v850
          %v852 = vpop.f32.mrf.mxu0
          %v853 = vadd.f32 %v776, %v852
          %854 = vdwg.mxu0
          %v855 = vld [vmem:[%s6] sm:$0x1]
          %v857 = vperm.slane %v855, 0
          %v859 = vadd.f32 %v836, %v857
          %v860 = vadd.f32 %v838, %v857
          %v861 = vadd.f32 %v841, %v857
          %v862 = vadd.f32 %v843, %v857
          %v863 = vadd.f32 %v846, %v857
          %v864 = vadd.f32 %v848, %v857
          %v865 = vadd.f32 %v851, %v857
          %v866 = vadd.f32 %v853, %v857
          %v867 = vmax.f32 %v859, 0.0
          %v868 = vmax.f32 %v860, 0.0
          %v869 = vmax.f32 %v861, 0.0
          %v870 = vmax.f32 %v862, 0.0
          %v871 = vmax.f32 %v863, 0.0
          %v872 = vmax.f32 %v864, 0.0
          %v873 = vmax.f32 %v865, 0.0
          %v874 = vmax.f32 %v866, 0.0
          %v875 = vpack.c.bf16 %v867, %v867
          %v876 = vpack.c.bf16 %v868, %v868
          %v877 = vpack.c.bf16 %v869, %v869
          %v878 = vpack.c.bf16 %v870, %v870
          %v879 = vpack.c.bf16 %v871, %v871
          %v880 = vpack.c.bf16 %v872, %v872
          %v881 = vpack.c.bf16 %v873, %v873
          %v882 = vpack.c.bf16 %v874, %v874
          %883 = vst [vmem:[%s394] sm:$0xf] %v875
          %884 = vst [vmem:[%s394 + $0x4] sm:$0xf] %v876
          %885 = vst [vmem:[%s394 + $0x8] sm:$0xf] %v877
          %886 = vst [vmem:[%s394 + $0xc] sm:$0xf] %v878
          %887 = vst [vmem:[%s394 + $0x10] sm:$0xf] %v879
          %888 = vst [vmem:[%s394 + $0x14] sm:$0xf] %v880
          %889 = vst [vmem:[%s394 + $0x18] sm:$0xf] %v881
          %890 = vst [vmem:[%s394 + $0x1c] sm:$0xf] %v882
        $region68: #{tpu_custom_call.1} parent=47 // pred_fallthru
          _
        %s891 = sand.u32 %s214, 1
        %s892 = scalar_lea.sflag [#allocation5], %s891
        %s893 = sand.u32 %s214, 1
        %s894 = smul.addr %s893, 32
        %s895 = scalar_lea.vmem [#allocation9], %s894
        // Predicated region
        $region69: #{tpu_custom_call.1} parent=47 // pred_check
          %p896 = pneg %p224
        $region70: #{tpu_custom_call.1} parent=47 // pred_check_branch
          %898 = sbr.rel (%p896) target = $region72
        $region71: #{tpu_custom_call.1} parent=47 // pred_region
          %s899 = smul.u32 8, %s29
          %901 = vsyncadd %s892, 0
          %s902 = smul.addr %s899, 4
          %s903 = scalar_lea.hbm %s7, %s902
          %s904 = sshll.u32 %s895, 4
          %s905 = int_to_ptr.vmem [resolvable:$true] %s904
          %s906 = sshll.u32 %s903, 4
          %s907 = int_to_ptr.hbm [resolvable:$true] %s906
          %912 = dma.vmem_to_hbm [thread:$0]  %s905, 512, %s907, %s892, 64, 64, 4
        $region72: #{tpu_custom_call.1} parent=47 // pred_fallthru
          _
      $region48: #{tpu_custom_call.1} parent=5 // pred_fallthru
        _
      %p913 = scmp.le.s32.totalorder 2, %s20
      // Predicated region
      $region73: #{tpu_custom_call.1} parent=5 // pred_check
        %p914 = pneg %p913
      $region74: #{tpu_custom_call.1} parent=5 // pred_check_branch
        %916 = sbr.rel (%p914) target = $region76
      $region75: #{tpu_custom_call.1} parent=5 // pred_region
        %s917 = ssub.s32 %s20, 2
        // Predicated region
        $region77: #{tpu_custom_call.1} parent=75 // pred_check
          %p918 = pneg %p230
        $region78: #{tpu_custom_call.1} parent=75 // pred_check_branch
          %920 = sbr.rel (%p918) target = $region80
        $region79: #{tpu_custom_call.1} parent=75 // pred_region
          %s921 = sand.u32 %s215, 1
          %s922 = scalar_lea.sflag [#allocation5], %s921
          %s923 = sand.u32 %s215, 1
          %s924 = smul.addr %s923, 32
          %s925 = scalar_lea.vmem [#allocation9], %s924
          %927 = dma.done %s922, 512
        $region80: #{tpu_custom_call.1} parent=75 // pred_fallthru
          _
      $region76: #{tpu_custom_call.1} parent=5 // pred_fallthru
        _
    $region6: #{tpu_custom_call.1} parent=1 // loop_footer
      %s24 = sadd.s32 1, %s20
    $region7: #{tpu_custom_call.1} parent=1 // loop_footer_branch
      %19 = sbr.rel target = $region3
    $region8: #{tpu_custom_call.1} parent=1 // loop_exit
      _
    %928 = vsyncpa [#allocation4], 1
    %s929 = scalar_lea.sflag [#allocation4], 1
    %930 = vsyncpa %s929, 1
    %931 = vsyncpa [#allocation7], 1
    %932 = vsyncpa [#allocation5], 1
    %s933 = scalar_lea.sflag [#allocation5], 1
    %934 = vsyncpa %s933, 1

</llo_original>
